<compile_context>
chip_gen: v7x
topology: tpu7x:2x2x1
jax: 0.10.0
libtpu: 0.0.40
codegen_flags: <defaults>
</compile_context>

<pallas_src>
import jax
import jax.numpy as jnp
from jax.experimental import pallas as pl
from jax.experimental.pallas import tpu as pltpu


# ---------------------------------------------------------------------------
# Kernel body
# ---------------------------------------------------------------------------
def _h_swish_kernel(x_ref, o_ref):
    x = x_ref[...]
    # relu6(x + 3) * (1/6); constants are weak-typed so bf16 stays bf16.
    y = jnp.clip(x + 3.0, 0.0, 6.0) * (1.0 / 6.0)
    o_ref[...] = (y * x).astype(o_ref.dtype)


def _h_swish_jnp(x):
    """Plain-jnp hard swish (used only for tiny ragged tails)."""
    return (jnp.clip(x + 3.0, 0.0, 6.0) * (1.0 / 6.0)) * x


# ---------------------------------------------------------------------------
# Hardware-aware parameters
# ---------------------------------------------------------------------------
def _hw_params():
    """(target_block_bytes, vmem_limit_bytes) per TPU generation."""
    try:
        vmem_cap = int(pltpu.get_tpu_info().vmem_capacity_bytes)
    except Exception:
        # Conservative defaults that fit every generation (4 x 8 MiB live
        # double-buffered in+out = 32 MiB <= 48 MiB <= 64 MiB physical on v7x).
        return 8 << 20, 48 << 20
    if vmem_cap <= (72 << 20):
        # v7x-class: 64 MiB VMEM, 3.2 TB/s HBM -> bigger blocks to amortize the
        # fixed per-grid-step overhead; 2 in + 2 out buffers = 40 MiB < 56 MiB.
        return 10 << 20, 56 << 20
    # v5e / v6e: 128 MiB VMEM, slower HBM -> 8 MiB blocks, generous headroom.
    return 8 << 20, 96 << 20


def _sublane_granularity(itemsize):
    # Native sublane tile: f32 -> 8, bf16/f16 -> 16, int8/fp8 -> 32.
    return {4: 8, 2: 16, 1: 32}.get(itemsize, 8)


# ---------------------------------------------------------------------------
# Tiling selection
# ---------------------------------------------------------------------------
def _choose_tiling(n, dtype, target_block_bytes):
    """Pick (rows, cols, tile_rows) with rows*cols == n, cols % 128 == 0,
    tile_rows | rows, blocks ~target_block_bytes, preferring an even grid of
    >= 4 steps for large arrays.  Returns None if no lane-dense factorization
    exists (caller uses the prefix + jnp-tail path)."""
    itemsize = jnp.dtype(dtype).itemsize
    g = _sublane_granularity(itemsize)

    cols = None
    # 1st preference: rows splittable into a >=4-step grid of g-multiple tiles.
    for c in (2048, 1024, 512, 256, 128):
        if n % c == 0 and (n // c) % (4 * g) == 0:
            cols = c
            break
    # 2nd: rows at least a multiple of the native sublane tile.
    if cols is None:
        for c in (2048, 1024, 512, 256, 128):
            if n % c == 0 and (n // c) % g == 0:
                cols = c
                break
    # 3rd: any lane-dense factorization at all.
    if cols is None:
        for c in (2048, 1024, 512, 256, 128):
            if n % c == 0:
                cols = c
                break
    if cols is None:
        return None

    rows = n // cols
    bytes_per_row = cols * itemsize
    total_bytes = rows * bytes_per_row

    max_tile = max(g, (target_block_bytes // bytes_per_row) // g * g)
    max_tile = min(max_tile, rows)
    if total_bytes > 2 * target_block_bytes:
        # Large array: force >= 4 pipelined steps so the input prefetch of
        # step i+1 overlaps the output writeback of step i-1 (and v7x's two
        # TensorCores each get >= 2 steps).
        max_tile = min(max_tile, max(g, (rows // 4) // g * g))

    def _find(require_even_grid):
        t = (max_tile // g) * g
        while t >= g:
            if rows % t == 0 and (not require_even_grid or (rows // t) % 2 == 0):
                return t
            t -= g
        return None

    tile_rows = _find(True)          # prefer an even grid (balanced on v7x)
    if tile_rows is None:
        tile_rows = _find(False)
    if tile_rows is None:
        tile_rows = rows             # single full block (legal: equals full dim)
        if rows * bytes_per_row > target_block_bytes:
            return None              # would blow VMEM; take the prefix path
    return rows, cols, tile_rows


# ---------------------------------------------------------------------------
# pallas_call wrapper
# ---------------------------------------------------------------------------
def _run_2d(x2d, rows, cols, tile_rows, dtype, vmem_limit_bytes):
    grid = (rows // tile_rows,)
    return pl.pallas_call(
        _h_swish_kernel,
        out_shape=jax.ShapeDtypeStruct((rows, cols), dtype),
        grid_spec=pl.GridSpec(
            grid=grid,
            in_specs=[pl.BlockSpec((tile_rows, cols), lambda i: (i, 0))],
            out_specs=pl.BlockSpec((tile_rows, cols), lambda i: (i, 0)),
        ),
        compiler_params=pltpu.CompilerParams(
            dimension_semantics=("parallel",),
            vmem_limit_bytes=vmem_limit_bytes,
        ),
    )(x2d)


def h_swish(x):
    """Hard-swish, elementwise. x: any shape, floating dtype."""
    orig_shape = x.shape
    dtype = x.dtype
    n = x.size
    itemsize = jnp.dtype(dtype).itemsize
    g = _sublane_granularity(itemsize)
    target_block_bytes, vmem_limit_bytes = _hw_params()

    tiling = _choose_tiling(n, dtype, target_block_bytes)
    if tiling is not None:
        rows, cols, tile_rows = tiling
        x2d = jnp.reshape(x, (rows, cols))          # collapse-only: free
        out2d = _run_2d(x2d, rows, cols, tile_rows, dtype, vmem_limit_bytes)
        return jnp.reshape(out2d, orig_shape)

    # Ragged / awkward sizes: run the kernel on the largest prefix that is a
    # multiple of the native tile (g x 128 elements); the tiny tail is done in
    # plain jnp.  Keeps the big region at 1x read + 1x write (no pad + slice).
    flat = jnp.reshape(x, (-1,))
    unit = g * 128
    n_main = (n // unit) * unit
    if n_main == 0:
        return jnp.reshape(_h_swish_jnp(flat), orig_shape)

    head = flat[:n_main]
    tail = flat[n_main:]
    tiling = _choose_tiling(n_main, dtype, target_block_bytes)
    if tiling is None:  # defensive; should not happen for n_main % (g*128) == 0
        return jnp.reshape(_h_swish_jnp(flat), orig_shape)
    rows, cols, tile_rows = tiling
    out_head = _run_2d(jnp.reshape(head, (rows, cols)), rows, cols, tile_rows,
                       dtype, vmem_limit_bytes)
    out = jnp.concatenate([jnp.reshape(out_head, (-1,)), _h_swish_jnp(tail)])
    return jnp.reshape(out, orig_shape)


def h_swish_ref(x):
    return (jnp.clip(x + 3.0, 0.0, 6.0) * (1.0 / 6.0)) * x


if __name__ == "__main__":
    key = jax.random.PRNGKey(0)

    # 1) NCHW f32 activation (the module's typical input).
    x = jax.random.normal(key, (2, 4, 16, 16), dtype=jnp.float32) * 4.0
    out = jax.block_until_ready(h_swish(x))
    assert out.shape == x.shape and out.dtype == x.dtype
    assert jnp.allclose(out, h_swish_ref(x), atol=1e-6, rtol=1e-6)

    # 2) bf16 path (exercises dtype-aware sublane granularity).
    xb = (jax.random.normal(key, (2, 4, 16, 32), dtype=jnp.float32) * 4.0
          ).astype(jnp.bfloat16)
    outb = jax.block_until_ready(h_swish(xb))
    assert outb.shape == xb.shape and outb.dtype == xb.dtype
    assert jnp.allclose(outb.astype(jnp.float32),
                        h_swish_ref(xb).astype(jnp.float32),
                        atol=1e-2, rtol=1e-2)

    # 3) Ragged size (not a multiple of 128): prefix kernel + jnp tail.
    xr = jax.random.normal(key, (1, 1100), dtype=jnp.float32) * 4.0
    outr = jax.block_until_ready(h_swish(xr))
    assert outr.shape == xr.shape and outr.dtype == xr.dtype
    assert jnp.allclose(outr, h_swish_ref(xr), atol=1e-6, rtol=1e-6)

    print("KERNEL_OK")
</pallas_src>

<mosaic_0001>
module attributes {stable_mosaic.version = 11 : i64} {
  func.func @_h_swish_kernel(%arg0: i32, %arg1: memref<8x256xf32, #tpu.memory_space<vmem>>, %arg2: memref<8x256xf32, #tpu.memory_space<vmem>>) attributes {dimension_semantics = [#tpu.dimension_semantics<parallel>], iteration_bounds = array<i64: 1>, scalar_prefetch = 0 : i64, scratch_operands = 0 : i64, tpu.core_type = #tpu.core_type<tc>, window_params = [{transform_indices = @transform_0, window_bounds = array<i64: 8, 256>}, {transform_indices = @transform_1, window_bounds = array<i64: 8, 256>}]} {
    %c0 = arith.constant 0 : index
    %c0_0 = arith.constant 0 : index
    %0 = vector.load %arg1[%c0, %c0_0] : memref<8x256xf32, #tpu.memory_space<vmem>>, vector<8x256xf32>
    %cst = arith.constant 3.000000e+00 : f32
    %1 = vector.broadcast %cst : f32 to vector<8x256xf32>
    %2 = arith.addf %0, %1 : vector<8x256xf32>
    %cst_1 = arith.constant 0.000000e+00 : f32
    %cst_2 = arith.constant 6.000000e+00 : f32
    %3 = vector.broadcast %cst_1 : f32 to vector<8x256xf32>
    %4 = arith.maximumf %3, %2 : vector<8x256xf32>
    %5 = vector.broadcast %cst_2 : f32 to vector<8x256xf32>
    %6 = arith.minimumf %5, %4 : vector<8x256xf32>
    %cst_3 = arith.constant 0.166666672 : f32
    %7 = vector.broadcast %cst_3 : f32 to vector<8x256xf32>
    %8 = arith.mulf %6, %7 : vector<8x256xf32>
    %9 = arith.mulf %8, %0 : vector<8x256xf32>
    %c0_4 = arith.constant 0 : index
    %c0_5 = arith.constant 0 : index
    %10 = vector.load %arg2[%c0_4, %c0_5] : memref<8x256xf32, #tpu.memory_space<vmem>>, vector<8x256xf32>
    tpu.vector_store %arg2[%c0_4, %c0_5], %9 {strides = array<i32>} : memref<8x256xf32, #tpu.memory_space<vmem>>, vector<8x256xf32>,
    return
  }
  func.func @transform_0(%arg0: i32) -> (i32, i32) {
    %c0_i32 = arith.constant 0 : i32
    %c0_i32_0 = arith.constant 0 : i32
    return %arg0, %c0_i32 : i32, i32
  }
  func.func @transform_1(%arg0: i32) -> (i32, i32) {
    %c0_i32 = arith.constant 0 : i32
    %c0_i32_0 = arith.constant 0 : i32
    return %arg0, %c0_i32 : i32, i32
  }
}

</mosaic_0001>

<llo_original>
// kernel: tpu_custom_call.1
$region0: #{tpu_custom_call.1}
  #allocation0 [shape = 'u32[]', space=smem, size = 0x4, offset = 0x4, fixed_abs, tag = 'smem constant byte address 0x4 - core index']
  #allocation1 [shape = 'u32[144,128]{1,0:T(1,128)}', space=vmem, size = 0x12000, scoped, tag = 'internal scratch']
  %s0 = inlined_call_operand.hbm [shape: f32[8,256], index: 0, kind: input, shape index: {}]
  %s1 = inlined_call_operand.hbm [shape: f32[8,256], index: 1, kind: output, shape index: {}]
  %s2 = sld [smem:[#allocation0]]
  $region18: #{tpu_custom_call.1} parent=0
    _
  %s4 = ssub.s32 1, %s2
  %s5 = scalar_select 0, %s4, %s2
  $region1: #{tpu_custom_call.1} parent=0
    #allocation2 [shape = 'u8[8192]{0}', space=vmem, size = 0x2000, scoped, tag = 'input window, operand 0, single buffered']
    #allocation3 [shape = 's32[1]{0}', space=sflag, size = 0x4, scoped, tag = 'scoped memory for tpu_custom_call.1']
    #allocation4 [shape = 's32[1]{0}', space=sflag, size = 0x4, scoped, tag = 'scoped memory for tpu_custom_call.1']
    #allocation5 [shape = 'u8[8192]{0}', space=vmem, size = 0x2000, scoped, tag = 'output window, operand 0, single buffered']
    %6 = vsyncpa [#allocation3], 0
    %7 = vsyncpa [#allocation4], 0
    // Predicated region
    $region2: #{tpu_custom_call.1} parent=1 // pred_check
      _
    $region3: #{tpu_custom_call.1} parent=1 // pred_check_branch
      %9 = sbr.rel (0) target = $region5
    $region4: #{tpu_custom_call.1} parent=1 // pred_region
      %s11 = ssub.s32 256, 256
      %12 = vsyncadd [#allocation3], %s11
      %s14 = sshll.u32 [#allocation2], 4
      %s15 = int_to_ptr.vmem [resolvable:$true] %s14
      %17 = dma.hbm_to_vmem [thread:$0]  %s0, 256, %s15, [#allocation3]
    $region5: #{tpu_custom_call.1} parent=1 // pred_fallthru
      _
    // Predicated region
    $region6: #{tpu_custom_call.1} parent=1 // pred_check
      _
    $region7: #{tpu_custom_call.1} parent=1 // pred_check_branch
      %19 = sbr.rel (0) target = $region9
    $region8: #{tpu_custom_call.1} parent=1 // pred_region
      %20 = dma.done [#allocation3], 256
    $region9: #{tpu_custom_call.1} parent=1 // pred_fallthru
      _
    %v21 = vld [vmem:[#allocation2] sm:$0xff]
    %v22 = vld [vmem:[#allocation2 + $0x8] sm:$0xff]
    %v23 = vadd.f32 %v21, 3.0
    %v24 = vadd.f32 %v22, 3.0
    %v25 = vmax.f32 %v23, 0.0
    %v26 = vmax.f32 %v24, 0.0
    %v27 = vmin.f32 %v25, 6.0
    %v28 = vmin.f32 %v26, 6.0
    %v29 = vmul.f32 %v27, 0.16666667
    %v30 = vmul.f32 %v28, 0.16666667
    %v31 = vmul.f32 %v29, %v21
    %v32 = vmul.f32 %v30, %v22
    %33 = vst [vmem:[#allocation5] sm:$0xff] %v31
    %34 = vst [vmem:[#allocation5 + $0x8] sm:$0xff] %v32
    // Predicated region
    $region10: #{tpu_custom_call.1} parent=1 // pred_check
      _
    $region11: #{tpu_custom_call.1} parent=1 // pred_check_branch
      %36 = sbr.rel (0) target = $region13
    $region12: #{tpu_custom_call.1} parent=1 // pred_region
      %s38 = ssub.s32 256, 256
      %39 = vsyncadd [#allocation4], %s38
      %s41 = sshll.u32 [#allocation5], 4
      %s42 = int_to_ptr.vmem [resolvable:$true] %s41
      %44 = dma.vmem_to_hbm [thread:$0]  %s42, 256, %s1, [#allocation4]
    $region13: #{tpu_custom_call.1} parent=1 // pred_fallthru
      _
    // Predicated region
    $region14: #{tpu_custom_call.1} parent=1 // pred_check
      _
    $region15: #{tpu_custom_call.1} parent=1 // pred_check_branch
      %46 = sbr.rel (0) target = $region17
    $region16: #{tpu_custom_call.1} parent=1 // pred_region
      %47 = dma.done [#allocation4], 256
    $region17: #{tpu_custom_call.1} parent=1 // pred_fallthru
      _
    %48 = vsyncpa [#allocation3], 1
    %49 = vsyncpa [#allocation4], 1

</llo_original>
